<compile_context>
chip_gen: v7x
topology: tpu7x:2x2x1
jax: 0.10.0
libtpu: 0.0.40
codegen_flags: <defaults>
</compile_context>

<pallas_src>
import jax
import jax.numpy as jnp
from jax.experimental import pallas as pl
from jax.experimental.pallas import tpu as pltpu

NO_DATA_VAL = -9999.0
LANES = 128
MAX_BLOCK_ROWS = 2048  # 2048 x 128 x 4B = 1 MiB per f32 input block


def _make_mae_kernel(n_elems: int, no_data_val: float):
    """Build the kernel closed over the static element count / sentinel."""

    def kernel(out_ref, tgt_ref, num_ref, den_ref, num_acc, den_acc):
        i = pl.program_id(0)

        @pl.when(i == 0)
        def _init():
            num_acc[...] = jnp.zeros_like(num_acc)
            den_acc[...] = jnp.zeros_like(den_acc)

        o = out_ref[...]
        t = tgt_ref[...]
        br, lanes = t.shape  # static block shape

        # Global flat index of every element in this block; anything past the
        # true element count (lane padding / OOB rows of the last, partially
        # out-of-bounds block) is masked out of both sums.
        row = jax.lax.broadcasted_iota(jnp.int32, (br, lanes), 0)
        col = jax.lax.broadcasted_iota(jnp.int32, (br, lanes), 1)
        flat_idx = (i * br + row) * lanes + col
        in_bounds = flat_idx < n_elems

        # Sentinel compare in the *native* dtype (exact-match semantics).
        not_nodata = t != jnp.asarray(no_data_val, dtype=t.dtype)
        valid = jnp.logical_and(in_bounds, not_nodata)

        # Accumulate in f32 regardless of input dtype (portable to v5e).
        abs_err = jnp.abs(o.astype(jnp.float32) - t.astype(jnp.float32))
        num_blk = jnp.where(valid, abs_err, 0.0)
        den_blk = valid.astype(jnp.float32)

        # Fold the (br, 128) block down onto the vreg-shaped (8, 128)
        # accumulators: pure VPU adds that hide under the input DMA.
        num_acc[...] += jnp.sum(num_blk.reshape(br // 8, 8, lanes), axis=0)
        den_acc[...] += jnp.sum(den_blk.reshape(br // 8, 8, lanes), axis=0)

        # Single cross-lane reduction + scalar store, only on the last step.
        @pl.when(i == pl.num_programs(0) - 1)
        def _finalize():
            num_ref[...] = jnp.full((1, 1), jnp.sum(num_acc[...]), jnp.float32)
            den_ref[...] = jnp.full((1, 1), jnp.sum(den_acc[...]), jnp.float32)

    return kernel


def mae_loss(output: jax.Array, target: jax.Array,
             no_data_val: float = NO_DATA_VAL) -> jax.Array:
    """Masked MAE: sum(|output-target| * (target != no_data)) / sum(mask)."""
    assert output.shape == target.shape
    n = int(output.size)

    out_f = output.reshape(-1)
    tgt_f = target.reshape(-1)

    # Only a sub-128-element tail ever needs padding (to make the lane-dense
    # 2-D view legal); padded elements are masked in-kernel via the flat-index
    # bound, so the pad value is irrelevant.
    rem = n % LANES
    if rem:
        pad = LANES - rem
        out_f = jnp.pad(out_f, (0, pad))
        tgt_f = jnp.pad(tgt_f, (0, pad))

    rows = out_f.shape[0] // LANES
    out2d = out_f.reshape(rows, LANES)
    tgt2d = tgt_f.reshape(rows, LANES)

    # Big blocks => HBM-bandwidth bound, not grid-overhead bound. For small
    # inputs, shrink the block to just cover the array (8-row aligned).
    block_rows = min(MAX_BLOCK_ROWS, ((rows + 7) // 8) * 8)
    n_blocks = pl.cdiv(rows, block_rows)

    kernel = _make_mae_kernel(n, no_data_val)

    num, den = pl.pallas_call(
        kernel,
        out_shape=(
            jax.ShapeDtypeStruct((1, 1), jnp.float32),
            jax.ShapeDtypeStruct((1, 1), jnp.float32),
        ),
        grid_spec=pltpu.PrefetchScalarGridSpec(
            num_scalar_prefetch=0,
            grid=(n_blocks,),
            in_specs=[
                pl.BlockSpec((block_rows, LANES), lambda i: (i, 0)),
                pl.BlockSpec((block_rows, LANES), lambda i: (i, 0)),
            ],
            out_specs=(
                pl.BlockSpec((1, 1), lambda i: (0, 0)),
                pl.BlockSpec((1, 1), lambda i: (0, 0)),
            ),
            scratch_shapes=[
                pltpu.VMEM((8, LANES), jnp.float32),
                pltpu.VMEM((8, LANES), jnp.float32),
            ],
        ),
        compiler_params=pltpu.CompilerParams(
            dimension_semantics=("arbitrary",),
        ),
    )(out2d, tgt2d)

    # Final scalar division in plain JAX glue (same div-by-zero semantics as
    # the PyTorch reference when every target element is no-data).
    return (num / den)[0, 0]


if __name__ == "__main__":
    key = jax.random.PRNGKey(0)
    k1, k2, k3 = jax.random.split(key, 3)

    # Small NCHW shapes, matching PyTorch conv conventions.
    shape = (2, 4, 16, 16)
    output = jax.random.normal(k1, shape, dtype=jnp.float32)
    target = jax.random.normal(k2, shape, dtype=jnp.float32)

    # Sprinkle some no-data pixels into the target.
    nodata_mask = jax.random.bernoulli(k3, p=0.2, shape=shape)
    target = jnp.where(nodata_mask, jnp.float32(NO_DATA_VAL), target)

    loss = mae_loss(output, target)
    jax.block_until_ready(loss)

    # Reference check in plain JAX (same semantics as the PyTorch module).
    mask = (target != NO_DATA_VAL).astype(jnp.float32)
    ref = jnp.sum(jnp.abs(output - target) * mask) / jnp.sum(mask)
    assert jnp.allclose(loss, ref, rtol=1e-5, atol=1e-5), (loss, ref)

    print("KERNEL_OK")
</pallas_src>

<mosaic_0001>
module attributes {stable_mosaic.version = 11 : i64} {
  func.func @kernel(%arg0: i32, %arg1: memref<16x128xf32, #tpu.memory_space<vmem>>, %arg2: memref<16x128xf32, #tpu.memory_space<vmem>>, %arg3: memref<1x1xf32, #tpu.memory_space<vmem>>, %arg4: memref<1x1xf32, #tpu.memory_space<vmem>>, %arg5: memref<8x128xf32, #tpu.memory_space<vmem>>, %arg6: memref<8x128xf32, #tpu.memory_space<vmem>>) attributes {dimension_semantics = [#tpu.dimension_semantics<arbitrary>], iteration_bounds = array<i64: 1>, scalar_prefetch = 0 : i64, scratch_operands = 2 : i64, tpu.core_type = #tpu.core_type<tc>, window_params = [{transform_indices = @transform_0, window_bounds = array<i64: 16, 128>}, {transform_indices = @transform_1, window_bounds = array<i64: 16, 128>}, {pipeline_mode = #tpu.pipeline_mode<synchronous>, transform_indices = @transform_2, window_bounds = array<i64: 1, 1>}, {pipeline_mode = #tpu.pipeline_mode<synchronous>, transform_indices = @transform_3, window_bounds = array<i64: 1, 1>}]} {
    %c0_i32 = arith.constant 0 : i32
    %0 = arith.cmpi eq, %arg0, %c0_i32 : i32
    %1 = arith.extui %0 : i1 to i32
    %c0_i32_0 = arith.constant 0 : i32
    %2 = arith.cmpi ne, %1, %c0_i32_0 : i32
    scf.if %2 {
      %cst_17 = arith.constant 0.000000e+00 : f32
      %37 = vector.broadcast %cst_17 : f32 to vector<8x128xf32>
      %c0_18 = arith.constant 0 : index
      %c0_19 = arith.constant 0 : index
      %38 = vector.load %arg5[%c0_18, %c0_19] : memref<8x128xf32, #tpu.memory_space<vmem>>, vector<8x128xf32>
      tpu.vector_store %arg5[%c0_18, %c0_19], %37 {strides = array<i32>} : memref<8x128xf32, #tpu.memory_space<vmem>>, vector<8x128xf32>,
      %cst_20 = arith.constant 0.000000e+00 : f32
      %39 = vector.broadcast %cst_20 : f32 to vector<8x128xf32>
      %c0_21 = arith.constant 0 : index
      %c0_22 = arith.constant 0 : index
      %40 = vector.load %arg6[%c0_21, %c0_22] : memref<8x128xf32, #tpu.memory_space<vmem>>, vector<8x128xf32>
      tpu.vector_store %arg6[%c0_21, %c0_22], %39 {strides = array<i32>} : memref<8x128xf32, #tpu.memory_space<vmem>>, vector<8x128xf32>,
    } else {
    }
    %c0 = arith.constant 0 : index
    %c0_1 = arith.constant 0 : index
    %3 = vector.load %arg1[%c0, %c0_1] : memref<16x128xf32, #tpu.memory_space<vmem>>, vector<16x128xf32>
    %c0_2 = arith.constant 0 : index
    %c0_3 = arith.constant 0 : index
    %4 = vector.load %arg2[%c0_2, %c0_3] : memref<16x128xf32, #tpu.memory_space<vmem>>, vector<16x128xf32>
    %5 = tpu.iota {dimensions = array<i32: 0>} : vector<16x128xi32>
    %6 = tpu.iota {dimensions = array<i32: 1>} : vector<16x128xi32>
    %c16_i32 = arith.constant 16 : i32
    %7 = arith.muli %arg0, %c16_i32 : i32
    %8 = vector.broadcast %7 : i32 to vector<16x128xi32>
    %9 = arith.addi %8, %5 : vector<16x128xi32>
    %c128_i32 = arith.constant 128 : i32
    %10 = vector.broadcast %c128_i32 : i32 to vector<16x128xi32>
    %11 = arith.muli %9, %10 : vector<16x128xi32>
    %12 = arith.addi %11, %6 : vector<16x128xi32>
    %c2048_i32 = arith.constant 2048 : i32
    %13 = vector.broadcast %c2048_i32 : i32 to vector<16x128xi32>
    %14 = arith.cmpi slt, %12, %13 : vector<16x128xi32>
    %cst = arith.constant -9.999000e+03 : f32
    %15 = vector.broadcast %cst : f32 to vector<16x128xf32>
    %16 = arith.cmpf one, %4, %15 : vector<16x128xf32>
    %17 = arith.andi %14, %16 : vector<16x128xi1>
    %18 = arith.subf %3, %4 : vector<16x128xf32>
    %19 = math.absf %18 : vector<16x128xf32>
    %cst_4 = arith.constant 0.000000e+00 : f32
    %20 = vector.broadcast %cst_4 : f32 to vector<16x128xf32>
    %21 = arith.select %17, %19, %20 : vector<16x128xi1>, vector<16x128xf32>
    %22 = arith.extui %17 : vector<16x128xi1> to vector<16x128xi32>
    %23 = arith.sitofp %22 : vector<16x128xi32> to vector<16x128xf32>
    %c0_5 = arith.constant 0 : index
    %c0_6 = arith.constant 0 : index
    %24 = vector.load %arg5[%c0_5, %c0_6] : memref<8x128xf32, #tpu.memory_space<vmem>>, vector<8x128xf32>
    %25 = vector.shape_cast %21 : vector<16x128xf32> to vector<2x8x128xf32>
    %cst_7 = arith.constant dense<0.000000e+00> : vector<8x128xf32>
    %26 = vector.multi_reduction <add>, %25, %cst_7 [0] : vector<2x8x128xf32> to vector<8x128xf32>
    %27 = arith.addf %24, %26 : vector<8x128xf32>
    %c0_8 = arith.constant 0 : index
    %c0_9 = arith.constant 0 : index
    %28 = vector.load %arg5[%c0_8, %c0_9] : memref<8x128xf32, #tpu.memory_space<vmem>>, vector<8x128xf32>
    tpu.vector_store %arg5[%c0_8, %c0_9], %27 {strides = array<i32>} : memref<8x128xf32, #tpu.memory_space<vmem>>, vector<8x128xf32>,
    %c0_10 = arith.constant 0 : index
    %c0_11 = arith.constant 0 : index
    %29 = vector.load %arg6[%c0_10, %c0_11] : memref<8x128xf32, #tpu.memory_space<vmem>>, vector<8x128xf32>
    %30 = vector.shape_cast %23 : vector<16x128xf32> to vector<2x8x128xf32>
    %cst_12 = arith.constant dense<0.000000e+00> : vector<8x128xf32>
    %31 = vector.multi_reduction <add>, %30, %cst_12 [0] : vector<2x8x128xf32> to vector<8x128xf32>
    %32 = arith.addf %29, %31 : vector<8x128xf32>
    %c0_13 = arith.constant 0 : index
    %c0_14 = arith.constant 0 : index
    %33 = vector.load %arg6[%c0_13, %c0_14] : memref<8x128xf32, #tpu.memory_space<vmem>>, vector<8x128xf32>
    tpu.vector_store %arg6[%c0_13, %c0_14], %32 {strides = array<i32>} : memref<8x128xf32, #tpu.memory_space<vmem>>, vector<8x128xf32>,
    %c0_i32_15 = arith.constant 0 : i32
    %34 = arith.cmpi eq, %arg0, %c0_i32_15 : i32
    %35 = arith.extui %34 : i1 to i32
    %c0_i32_16 = arith.constant 0 : i32
    %36 = arith.cmpi ne, %35, %c0_i32_16 : i32
    scf.if %36 {
      %c0_17 = arith.constant 0 : index
      %c0_18 = arith.constant 0 : index
      %37 = vector.load %arg5[%c0_17, %c0_18] : memref<8x128xf32, #tpu.memory_space<vmem>>, vector<8x128xf32>
      %38 = vector.shape_cast %37 : vector<8x128xf32> to vector<1x8x128xf32>
      %cst_19 = arith.constant dense<0.000000e+00> : vector<1xf32>
      %39 = vector.multi_reduction <add>, %38, %cst_19 [1, 2] : vector<1x8x128xf32> to vector<1xf32>
      %40 = vector.shape_cast %39 : vector<1xf32> to vector<1x1x1xf32>
      %41 = vector.extract %40[0, 0, 0] : f32 from vector<1x1x1xf32>
      %42 = vector.broadcast %41 : f32 to vector<1x1xf32>
      %c0_20 = arith.constant 0 : index
      %c0_21 = arith.constant 0 : index
      %43 = vector.load %arg3[%c0_20, %c0_21] : memref<1x1xf32, #tpu.memory_space<vmem>>, vector<1x1xf32>
      tpu.vector_store %arg3[%c0_20, %c0_21], %42 {strides = array<i32>} : memref<1x1xf32, #tpu.memory_space<vmem>>, vector<1x1xf32>,
      %c0_22 = arith.constant 0 : index
      %c0_23 = arith.constant 0 : index
      %44 = vector.load %arg6[%c0_22, %c0_23] : memref<8x128xf32, #tpu.memory_space<vmem>>, vector<8x128xf32>
      %45 = vector.shape_cast %44 : vector<8x128xf32> to vector<1x8x128xf32>
      %cst_24 = arith.constant dense<0.000000e+00> : vector<1xf32>
      %46 = vector.multi_reduction <add>, %45, %cst_24 [1, 2] : vector<1x8x128xf32> to vector<1xf32>
      %47 = vector.shape_cast %46 : vector<1xf32> to vector<1x1x1xf32>
      %48 = vector.extract %47[0, 0, 0] : f32 from vector<1x1x1xf32>
      %49 = vector.broadcast %48 : f32 to vector<1x1xf32>
      %c0_25 = arith.constant 0 : index
      %c0_26 = arith.constant 0 : index
      %50 = vector.load %arg4[%c0_25, %c0_26] : memref<1x1xf32, #tpu.memory_space<vmem>>, vector<1x1xf32>
      tpu.vector_store %arg4[%c0_25, %c0_26], %49 {strides = array<i32>} : memref<1x1xf32, #tpu.memory_space<vmem>>, vector<1x1xf32>,
    } else {
    }
    return
  }
  func.func @transform_0(%arg0: i32) -> (i32, i32) {
    %c0_i32 = arith.constant 0 : i32
    %c0_i32_0 = arith.constant 0 : i32
    return %arg0, %c0_i32 : i32, i32
  }
  func.func @transform_1(%arg0: i32) -> (i32, i32) {
    %c0_i32 = arith.constant 0 : i32
    %c0_i32_0 = arith.constant 0 : i32
    return %arg0, %c0_i32 : i32, i32
  }
  func.func @transform_2(%arg0: i32) -> (i32, i32) {
    %c0_i32 = arith.constant 0 : i32
    %c0_i32_0 = arith.constant 0 : i32
    %c0_i32_1 = arith.constant 0 : i32
    return %c0_i32, %c0_i32_0 : i32, i32
  }
  func.func @transform_3(%arg0: i32) -> (i32, i32) {
    %c0_i32 = arith.constant 0 : i32
    %c0_i32_0 = arith.constant 0 : i32
    %c0_i32_1 = arith.constant 0 : i32
    return %c0_i32, %c0_i32_0 : i32, i32
  }
}

</mosaic_0001>

<llo_original>
// kernel: tpu_custom_call.1
$region0: #{tpu_custom_call.1}
  #allocation0 [shape = 'u32[]', space=smem, size = 0x4, offset = 0x4, fixed_abs, tag = 'smem constant byte address 0x4 - core index']
  #allocation1 [shape = 'u32[144,128]{1,0:T(1,128)}', space=vmem, size = 0x12000, scoped, tag = 'internal scratch']
  #allocation2 [shape = 'f32[8,128]{1,0:T(8,128)}', space=vmem, size = 0x1000, scoped, tag = 'scratch operand']
  #allocation3 [shape = 'f32[8,128]{1,0:T(8,128)}', space=vmem, size = 0x1000, scoped, tag = 'scratch operand']
  %s0 = inlined_call_operand.hbm [shape: f32[16,128], index: 0, kind: input, shape index: {}]
  %s1 = inlined_call_operand.hbm [shape: f32[16,128], index: 1, kind: input, shape index: {}]
  %s2 = inlined_call_operand.hbm [shape: f32[1,1], index: 2, kind: output, shape index: {0}]
  %s3 = inlined_call_operand.hbm [shape: f32[1,1], index: 3, kind: output, shape index: {1}]
  %4 = xla_tuple %s2, %s3
  %s5 = sld [smem:[#allocation0]]
  $region42: #{tpu_custom_call.1} parent=0
    _
  %s7 = ssub.s32 1, %s5
  %s8 = scalar_select 0, %s7, %s5
  $region1: #{tpu_custom_call.1} parent=0
    #allocation4 [shape = 'u8[8192]{0}', space=vmem, size = 0x2000, scoped, tag = 'input window, operand 0, single buffered']
    #allocation5 [shape = 's32[1]{0}', space=sflag, size = 0x4, scoped, tag = 'scoped memory for tpu_custom_call.1']
    #allocation6 [shape = 's32[1]{0}', space=sflag, size = 0x4, scoped, tag = 'scoped memory for tpu_custom_call.1']
    #allocation7 [shape = 'u8[8192]{0}', space=vmem, size = 0x2000, scoped, tag = 'input window, operand 1, single buffered']
    #allocation8 [shape = 's32[1]{0}', space=sflag, size = 0x4, scoped, tag = 'scoped memory for tpu_custom_call.1']
    #allocation9 [shape = 'u8[512]{0}', space=vmem, size = 0x400, scoped, tag = 'output window, operand 0, single buffered']
    #allocation10 [shape = 'u8[512]{0}', space=vmem, size = 0x400, scoped, tag = 'output window, operand 1, single buffered']
    #allocation11 [shape = 's32[1]{0}', space=sflag, size = 0x4, scoped, tag = 'scoped memory for tpu_custom_call.1']
    %9 = vsyncpa [#allocation5], 0
    %10 = vsyncpa [#allocation8], 0
    %11 = vsyncpa [#allocation6], 0
    %12 = vsyncpa [#allocation11], 0
    // Predicated region
    $region2: #{tpu_custom_call.1} parent=1 // pred_check
      _
    $region3: #{tpu_custom_call.1} parent=1 // pred_check_branch
      %14 = sbr.rel (0) target = $region5
    $region4: #{tpu_custom_call.1} parent=1 // pred_region
      %s16 = ssub.s32 256, 256
      %17 = vsyncadd [#allocation5], %s16
      %s18 = sshll.u32 [#allocation4], 4
      %s19 = int_to_ptr.vmem [resolvable:$true] %s18
      %24 = dma.hbm_to_vmem [thread:$0]  %s0, 256, %s19, [#allocation5], 128, 128, 8
    $region5: #{tpu_custom_call.1} parent=1 // pred_fallthru
      _
    // Predicated region
    $region6: #{tpu_custom_call.1} parent=1 // pred_check
      _
    $region7: #{tpu_custom_call.1} parent=1 // pred_check_branch
      %26 = sbr.rel (0) target = $region9
    $region8: #{tpu_custom_call.1} parent=1 // pred_region
      %s28 = ssub.s32 256, 256
      %29 = vsyncadd [#allocation8], %s28
      %s30 = sshll.u32 [#allocation7], 4
      %s31 = int_to_ptr.vmem [resolvable:$true] %s30
      %36 = dma.hbm_to_vmem [thread:$0]  %s1, 256, %s31, [#allocation8], 128, 128, 8
    $region9: #{tpu_custom_call.1} parent=1 // pred_fallthru
      _
    // Predicated region
    $region10: #{tpu_custom_call.1} parent=1 // pred_check
      _
    $region11: #{tpu_custom_call.1} parent=1 // pred_check_branch
      %38 = sbr.rel (0) target = $region13
    $region12: #{tpu_custom_call.1} parent=1 // pred_region
      %39 = dma.done [#allocation5], 256
    $region13: #{tpu_custom_call.1} parent=1 // pred_fallthru
      _
    // Predicated region
    $region14: #{tpu_custom_call.1} parent=1 // pred_check
      _
    $region15: #{tpu_custom_call.1} parent=1 // pred_check_branch
      %41 = sbr.rel (0) target = $region17
    $region16: #{tpu_custom_call.1} parent=1 // pred_region
      %42 = dma.done [#allocation8], 256
    $region17: #{tpu_custom_call.1} parent=1 // pred_fallthru
      _
    %p43 = scmp.eq.s32.totalorder 0, 0
    // Predicated region
    $region18: #{tpu_custom_call.1} parent=1 // pred_check
      %p44 = pneg %p43
    $region19: #{tpu_custom_call.1} parent=1 // pred_check_branch
      %46 = sbr.rel (%p44) target = $region21
    $region20: #{tpu_custom_call.1} parent=1 // pred_region
      %47 = vst [vmem:[#allocation2] sm:$0xff] 0.0
      %48 = vst [vmem:[#allocation3] sm:$0xff] 0.0
    $region21: #{tpu_custom_call.1} parent=1 // pred_fallthru
      _
    %v49 = vld [vmem:[#allocation4] sm:$0xff]
    %v50 = vld [vmem:[#allocation4 + $0x8] sm:$0xff]
    %v51 = vld [vmem:[#allocation7] sm:$0xff]
    %v52 = vld [vmem:[#allocation7 + $0x8] sm:$0xff]
    %v53 = vlaneseq
    %v54 = vshrl.u32 %v53, 7
    %v55 = vadd.s32 %v54, 8
    %v56 = vlaneseq
    %v57 = vand.u32 %v56, 127
    %s58 = smul.u32 0, 16
    %v59 = vstv %s58
    %v60 = vadd.s32 %v59, %v54
    %v61 = vadd.s32 %v59, %v55
    %v62 = vmul.u32 %v60, 128
    %v63 = vmul.u32 %v61, 128
    %v64 = vadd.s32 %v62, %v57
    %v65 = vadd.s32 %v63, %v57
    %vm66 = vcmp.lt.s32.totalorder %v64, 2048
    %vm67 = vcmp.lt.s32.totalorder %v65, 2048
    %vm68 = vcmp.ne.f32.partialorder %v51, -9999.0
    %vm69 = vcmp.ne.f32.partialorder %v52, -9999.0
    %vm70 = vmand %vm66, %vm68
    %vm71 = vmand %vm67, %vm69
    %v72 = vsub.f32 %v49, %v51
    %v73 = vsub.f32 %v50, %v52
    %v74 = vand.u32 2147483647, %v72
    %v75 = vand.u32 2147483647, %v73
    %v76 = vsel %vm70, %v74, 0.0
    %v77 = vsel %vm71, %v75, 0.0
    %v78 = vsel %vm70, 1, 0
    %v79 = vsel %vm71, 1, 0
    %v80 = vcvt.s32.f32 %v78
    %v81 = vcvt.s32.f32 %v79
    %v82 = vld [vmem:[#allocation2] sm:$0xff]
    %v83 = vadd.f32 %v76, %v77
    %v84 = vadd.f32 %v82, %v83
    %85 = vst [vmem:[#allocation2] sm:$0xff] %v84
    %v86 = vld [vmem:[#allocation3] sm:$0xff]
    %v87 = vadd.f32 %v80, %v81
    %v88 = vadd.f32 %v86, %v87
    %89 = vst [vmem:[#allocation3] sm:$0xff] %v88
    // Predicated region
    $region22: #{tpu_custom_call.1} parent=1 // pred_check
      %p90 = pneg %p43
    $region23: #{tpu_custom_call.1} parent=1 // pred_check_branch
      %92 = sbr.rel (%p90) target = $region25
    $region24: #{tpu_custom_call.1} parent=1 // pred_region
      %v93 = vld [vmem:[#allocation2] sm:$0xff]
      %94 = vadd.xlane.f32.xlu0 %v93
      %v95 = vpop.xlane.xlu0 %94
      %v96 = vrot.slane %v95, 4
      %v97 = vadd.f32 %v95, %v96
      %v98 = vrot.slane %v97, 2
      %v99 = vadd.f32 %v97, %v98
      %v100 = vrot.slane %v99, 1
      %v101 = vadd.f32 %v99, %v100
      %s102 = vtos %v101
      %v103 = vstv %s102
      %vm104 = vcmask 0
      %105 = vst.msk [vmem:[#allocation9] sm:$0x1] %vm104, %v103
      %v106 = vld [vmem:[#allocation3] sm:$0xff]
      %107 = vadd.xlane.f32.xlu0 %v106
      %v108 = vpop.xlane.xlu0 %107
      %v109 = vrot.slane %v108, 4
      %v110 = vadd.f32 %v108, %v109
      %v111 = vrot.slane %v110, 2
      %v112 = vadd.f32 %v110, %v111
      %v113 = vrot.slane %v112, 1
      %v114 = vadd.f32 %v112, %v113
      %s115 = vtos %v114
      %v116 = vstv %s115
      %117 = vst.msk [vmem:[#allocation10] sm:$0x1] %vm104, %v116
    $region25: #{tpu_custom_call.1} parent=1 // pred_fallthru
      _
    // Predicated region
    $region26: #{tpu_custom_call.1} parent=1 // pred_check
      _
    $region27: #{tpu_custom_call.1} parent=1 // pred_check_branch
      %119 = sbr.rel (0) target = $region29
    $region28: #{tpu_custom_call.1} parent=1 // pred_region
      %s121 = ssub.s32 16, 16
      %122 = vsyncadd [#allocation6], %s121
      %s124 = sshll.u32 [#allocation9], 4
      %s125 = int_to_ptr.vmem [resolvable:$true] %s124
      %127 = dma.vmem_to_hbm [thread:$0]  %s125, 16, %s2, [#allocation6]
    $region29: #{tpu_custom_call.1} parent=1 // pred_fallthru
      _
    // Predicated region
    $region30: #{tpu_custom_call.1} parent=1 // pred_check
      _
    $region31: #{tpu_custom_call.1} parent=1 // pred_check_branch
      %129 = sbr.rel (0) target = $region33
    $region32: #{tpu_custom_call.1} parent=1 // pred_region
      %s131 = ssub.s32 16, 16
      %132 = vsyncadd [#allocation11], %s131
      %s134 = sshll.u32 [#allocation10], 4
      %s135 = int_to_ptr.vmem [resolvable:$true] %s134
      %137 = dma.vmem_to_hbm [thread:$0]  %s135, 16, %s3, [#allocation11]
    $region33: #{tpu_custom_call.1} parent=1 // pred_fallthru
      _
    // Predicated region
    $region34: #{tpu_custom_call.1} parent=1 // pred_check
      _
    $region35: #{tpu_custom_call.1} parent=1 // pred_check_branch
      %139 = sbr.rel (0) target = $region37
    $region36: #{tpu_custom_call.1} parent=1 // pred_region
      %140 = dma.done [#allocation6], 16
    $region37: #{tpu_custom_call.1} parent=1 // pred_fallthru
      _
    // Predicated region
    $region38: #{tpu_custom_call.1} parent=1 // pred_check
      _
    $region39: #{tpu_custom_call.1} parent=1 // pred_check_branch
      %142 = sbr.rel (0) target = $region41
    $region40: #{tpu_custom_call.1} parent=1 // pred_region
      %143 = dma.done [#allocation11], 16
    $region41: #{tpu_custom_call.1} parent=1 // pred_fallthru
      _
    %144 = vsyncpa [#allocation5], 1
    %145 = vsyncpa [#allocation8], 1
    %146 = vsyncpa [#allocation6], 1
    %147 = vsyncpa [#allocation11], 1

</llo_original>
